<compile_context>
chip_gen: v7x
topology: tpu7x:2x2x1
jax: 0.10.0
libtpu: 0.0.40
codegen_flags: <defaults>
</compile_context>

<pallas_src>
import functools

import jax
import jax.numpy as jnp
import numpy as np
from jax.experimental import pallas as pl
from jax.experimental.pallas import tpu as pltpu


def _ortho_fused_kernel(p_ref, x_ref, nulled_ref, pooled_ref, *, hw, tile_hw):
    """One grid step (b, j).

    p_ref:      (C, C)        symmetric null-space projector (replicated)
    x_ref:      (C, tile_hw)  lane-dense slab of x[b] (channels x spatial)
    nulled_ref: (C, tile_hw)  projected slab: P @ x
    pooled_ref: (C, 1)        per-batch channel-sum accumulator (resident
                              across the HW-tile axis)
    """
    j = pl.program_id(1)
    x = x_ref[...]

    # Projection: each output column depends only on the same input column, so
    # any garbage in a ragged last tile stays in columns that are dropped at
    # writeback.
    nulled_ref[...] = jnp.dot(
        p_ref[...], x, preferred_element_type=jnp.float32
    ).astype(nulled_ref.dtype)

    # Fused mean-pool partial sums (f32). Mask the ragged last tile so garbage
    # lanes never enter the reduction (static Python branch: no cost when the
    # tiling is exact).
    if hw % tile_hw == 0:
        xs = x.astype(jnp.float32)
    else:
        lane = jax.lax.broadcasted_iota(jnp.int32, x.shape, 1)
        valid = lane < (hw - j * tile_hw)
        xs = jnp.where(valid, x.astype(jnp.float32), 0.0)
    part = jnp.sum(xs, axis=1, keepdims=True)  # (C, 1)

    @pl.when(j == 0)
    def _():
        pooled_ref[...] = jnp.zeros_like(pooled_ref)

    pooled_ref[...] += part


def _ortho_pallas(P, x3, *, max_block_bytes):
    """Runs the fused projection + pooled-sum kernel on x3 = (B, C, HW)."""
    B, C, HW = x3.shape
    itemsize = jnp.dtype(x3.dtype).itemsize

    # Largest multiple-of-128 lane tile whose block is <= max_block_bytes.
    cap = max(128, (max_block_bytes // (C * itemsize)) // 128 * 128)
    tile_hw = HW if HW <= cap else cap      # tile == full dim when it fits
    n_hw = pl.cdiv(HW, tile_hw)

    kernel = functools.partial(_ortho_fused_kernel, hw=HW, tile_hw=tile_hw)

    # 2 buffers x (input + output) blocks + small P/pooled + margin;
    # kept well under v7x's 64 MiB physical VMEM.
    block_bytes = C * tile_hw * itemsize
    vmem_limit = int(min(max(4 * block_bytes + 4 * 1024 * 1024,
                             16 * 1024 * 1024),
                         48 * 1024 * 1024))

    nulled3, pooled_sum = pl.pallas_call(
        kernel,
        out_shape=(
            jax.ShapeDtypeStruct((B, C, HW), x3.dtype),
            jax.ShapeDtypeStruct((B, C, 1), jnp.float32),
        ),
        grid_spec=pltpu.PrefetchScalarGridSpec(
            num_scalar_prefetch=0,
            grid=(B, n_hw),
            in_specs=[
                pl.BlockSpec((C, C), lambda b, j: (0, 0)),            # P (full)
                pl.BlockSpec((None, C, tile_hw), lambda b, j: (b, 0, j)),
            ],
            out_specs=(
                pl.BlockSpec((None, C, tile_hw), lambda b, j: (b, 0, j)),
                pl.BlockSpec((None, C, 1), lambda b, j: (b, 0, 0)),    # accum
            ),
        ),
        compiler_params=pltpu.CompilerParams(
            dimension_semantics=("parallel", "arbitrary"),
            vmem_limit_bytes=vmem_limit,
        ),
    )(P, x3)
    return nulled3, pooled_sum


def ortho_forward(x, M, *, max_block_bytes=2 * 1024 * 1024):
    """Forward of Ortho: returns (nulled_x, layer_repr).

    x: (B, C, *spatial) with C = input_size; M: (C, D) with D = dim.
    """
    assert x.ndim >= 3, "Ortho forward expects x of shape [batch, input_size, ...]"
    B, C = x.shape[0], x.shape[1]
    I, D = M.shape
    assert C == I, "channel dim of x must equal input_size"
    HW = 1
    for s in x.shape[2:]:
        HW *= int(s)

    # --- parameter-only glue ------------------------------------------------
    # TODO(synk): torch.svd has no Pallas primitive; computed with
    # jnp.linalg.svd in the wrapper.  null_basis = U[:I-D] (first ROWS of U),
    # exactly as the PyTorch module does; P = N^T N is symmetric and depends
    # only on the parameter M, so it is hoisted out of the kernel.
    U, _, _ = jnp.linalg.svd(M, full_matrices=True)
    null_basis = U[: I - D]                        # (I - D, I)
    P = (null_basis.T @ null_basis).astype(x.dtype)  # (C, C)

    # --- fused kernel: nulled = P @ x (per column) + channel sums -----------
    x3 = x.reshape(B, C, HW)                       # metadata-only
    nulled3, pooled_sum = _ortho_pallas(P, x3, max_block_bytes=max_block_bytes)
    nulled = nulled3.reshape(x.shape)              # metadata-only
    nulled = jax.lax.stop_gradient(nulled)         # torch .detach()

    # --- tiny layer_repr path (plain JAX) ------------------------------------
    pooled = pooled_sum.reshape(B, C) / float(HW)  # mean over spatial dims
    layer_repr = pooled @ M                        # (B, D)
    return nulled, layer_repr


if __name__ == "__main__":
    key = jax.random.PRNGKey(0)
    k_x, k_m, k_x2 = jax.random.split(key, 3)

    # Small shapes consistent with the module: x = [batch, input_size, H, W]
    B, C, H, W = 2, 16, 32, 32
    INPUT_SIZE, DIM = C, 4

    x = jax.random.normal(k_x, (B, C, H, W), dtype=jnp.float32)

    # nn.init.xavier_normal_: std = sqrt(2 / (fan_in + fan_out))
    std = (2.0 / (INPUT_SIZE + DIM)) ** 0.5
    M = std * jax.random.normal(k_m, (INPUT_SIZE, DIM), dtype=jnp.float32)

    nulled_x, layer_repr = ortho_forward(x, M)
    jax.block_until_ready((nulled_x, layer_repr))

    # Pure-JAX reference (same SVD convention as the torch module).
    def reference(xr, Mr):
        pooled = xr.mean(axis=(2, 3))
        repr_ = pooled @ Mr
        Ur, _, _ = jnp.linalg.svd(Mr, full_matrices=True)
        nb = Ur[: Mr.shape[0] - Mr.shape[1]]
        Pr = nb.T @ nb
        nulled = jnp.einsum("kc,bkhw->bchw", Pr, xr)
        return nulled, repr_

    nulled_ref, repr_ref = reference(x, M)
    assert nulled_x.shape == (B, C, H, W)
    assert layer_repr.shape == (B, DIM)
    np.testing.assert_allclose(np.asarray(layer_repr), np.asarray(repr_ref),
                               rtol=1e-4, atol=1e-4)
    np.testing.assert_allclose(np.asarray(nulled_x), np.asarray(nulled_ref),
                               rtol=1e-4, atol=1e-4)

    # Ragged / multi-tile path: H*W = 400 (not a multiple of 128) and a tiny
    # block budget force tile_hw = 256 -> 2 HW tiles with a masked last tile.
    x2 = jax.random.normal(k_x2, (B, C, 20, 20), dtype=jnp.float32)
    nulled2, repr2 = ortho_forward(x2, M, max_block_bytes=16 * 1024)
    jax.block_until_ready((nulled2, repr2))
    nulled2_ref, repr2_ref = reference(x2, M)
    np.testing.assert_allclose(np.asarray(repr2), np.asarray(repr2_ref),
                               rtol=1e-4, atol=1e-4)
    np.testing.assert_allclose(np.asarray(nulled2), np.asarray(nulled2_ref),
                               rtol=1e-4, atol=1e-4)

    print("KERNEL_OK")
</pallas_src>

<mosaic_0001>
module attributes {stable_mosaic.version = 11 : i64} {
  func.func @_ortho_fused_kernel(%arg0: i32, %arg1: i32, %arg2: memref<16x16xf32, #tpu.memory_space<vmem>>, %arg3: memref<1x16x1024xf32, #tpu.memory_space<vmem>>, %arg4: memref<1x16x1024xf32, #tpu.memory_space<vmem>>, %arg5: memref<1x16x1xf32, #tpu.memory_space<vmem>>) attributes {dimension_semantics = [#tpu.dimension_semantics<parallel>, #tpu.dimension_semantics<arbitrary>], iteration_bounds = array<i64: 2, 1>, scalar_prefetch = 0 : i64, scratch_operands = 0 : i64, tpu.core_type = #tpu.core_type<tc>, window_params = [{pipeline_mode = #tpu.pipeline_mode<synchronous>, transform_indices = @transform_0, window_bounds = array<i64: 16, 16>}, {transform_indices = @transform_1, window_bounds = array<i64: 1, 16, 1024>}, {transform_indices = @transform_2, window_bounds = array<i64: 1, 16, 1024>}, {transform_indices = @transform_3, window_bounds = array<i64: 1, 16, 1>}]} {
    %c0 = arith.constant 0 : index
    %c0_0 = arith.constant 0 : index
    %c0_1 = arith.constant 0 : index
    %0 = vector.load %arg3[%c0, %c0_0, %c0_1] : memref<1x16x1024xf32, #tpu.memory_space<vmem>>, vector<1x16x1024xf32>
    %1 = vector.shape_cast %0 : vector<1x16x1024xf32> to vector<16x1024xf32>
    %c0_2 = arith.constant 0 : index
    %c0_3 = arith.constant 0 : index
    %2 = vector.load %arg2[%c0_2, %c0_3] : memref<16x16xf32, #tpu.memory_space<vmem>>, vector<16x16xf32>
    %cst = arith.constant dense<0.000000e+00> : vector<16x1024xf32>
    %3 = tpu.matmul %2, %1, %cst {dimension_numbers = #tpu.dot_dimension_numbers<[1], [0], [0], [1], [0, 0, 1, 1], [], []>} : vector<16x16xf32>, vector<16x1024xf32>, vector<16x1024xf32> -> vector<16x1024xf32>
    %c0_4 = arith.constant 0 : index
    %c0_5 = arith.constant 0 : index
    %c0_6 = arith.constant 0 : index
    %4 = vector.load %arg4[%c0_4, %c0_5, %c0_6] : memref<1x16x1024xf32, #tpu.memory_space<vmem>>, vector<1x16x1024xf32>
    %5 = vector.shape_cast %4 : vector<1x16x1024xf32> to vector<16x1024xf32>
    %6 = vector.shape_cast %3 : vector<16x1024xf32> to vector<1x16x1024xf32>
    tpu.vector_store %arg4[%c0_4, %c0_5, %c0_6], %6 {strides = array<i32>} : memref<1x16x1024xf32, #tpu.memory_space<vmem>>, vector<1x16x1024xf32>,
    %cst_7 = arith.constant dense<0.000000e+00> : vector<16xf32>
    %7 = vector.multi_reduction <add>, %1, %cst_7 [1] : vector<16x1024xf32> to vector<16xf32>
    %8 = vector.shape_cast %7 : vector<16xf32> to vector<16x1xf32>
    %c0_i32 = arith.constant 0 : i32
    %9 = arith.cmpi eq, %arg1, %c0_i32 : i32
    %10 = arith.extui %9 : i1 to i32
    %c0_i32_8 = arith.constant 0 : i32
    %11 = arith.cmpi ne, %10, %c0_i32_8 : i32
    scf.if %11 {
      %cst_15 = arith.constant 0.000000e+00 : f32
      %18 = vector.broadcast %cst_15 : f32 to vector<16x1xf32>
      %c0_16 = arith.constant 0 : index
      %c0_17 = arith.constant 0 : index
      %c0_18 = arith.constant 0 : index
      %19 = vector.load %arg5[%c0_16, %c0_17, %c0_18] : memref<1x16x1xf32, #tpu.memory_space<vmem>>, vector<1x16x1xf32>
      %20 = vector.shape_cast %19 : vector<1x16x1xf32> to vector<16x1xf32>
      %21 = vector.shape_cast %18 : vector<16x1xf32> to vector<1x16x1xf32>
      tpu.vector_store %arg5[%c0_16, %c0_17, %c0_18], %21 {strides = array<i32>} : memref<1x16x1xf32, #tpu.memory_space<vmem>>, vector<1x16x1xf32>,
    } else {
    }
    %c0_9 = arith.constant 0 : index
    %c0_10 = arith.constant 0 : index
    %c0_11 = arith.constant 0 : index
    %12 = vector.load %arg5[%c0_9, %c0_10, %c0_11] : memref<1x16x1xf32, #tpu.memory_space<vmem>>, vector<1x16x1xf32>
    %13 = vector.shape_cast %12 : vector<1x16x1xf32> to vector<16x1xf32>
    %14 = arith.addf %13, %8 : vector<16x1xf32>
    %c0_12 = arith.constant 0 : index
    %c0_13 = arith.constant 0 : index
    %c0_14 = arith.constant 0 : index
    %15 = vector.load %arg5[%c0_12, %c0_13, %c0_14] : memref<1x16x1xf32, #tpu.memory_space<vmem>>, vector<1x16x1xf32>
    %16 = vector.shape_cast %15 : vector<1x16x1xf32> to vector<16x1xf32>
    %17 = vector.shape_cast %14 : vector<16x1xf32> to vector<1x16x1xf32>
    tpu.vector_store %arg5[%c0_12, %c0_13, %c0_14], %17 {strides = array<i32>} : memref<1x16x1xf32, #tpu.memory_space<vmem>>, vector<1x16x1xf32>,
    return
  }
  func.func @transform_0(%arg0: i32, %arg1: i32) -> (i32, i32) {
    %c0_i32 = arith.constant 0 : i32
    %c0_i32_0 = arith.constant 0 : i32
    %c0_i32_1 = arith.constant 0 : i32
    return %c0_i32, %c0_i32_0 : i32, i32
  }
  func.func @transform_1(%arg0: i32, %arg1: i32) -> (i32, i32, i32) {
    %c0_i32 = arith.constant 0 : i32
    %c0_i32_0 = arith.constant 0 : i32
    return %arg0, %c0_i32, %arg1 : i32, i32, i32
  }
  func.func @transform_2(%arg0: i32, %arg1: i32) -> (i32, i32, i32) {
    %c0_i32 = arith.constant 0 : i32
    %c0_i32_0 = arith.constant 0 : i32
    return %arg0, %c0_i32, %arg1 : i32, i32, i32
  }
  func.func @transform_3(%arg0: i32, %arg1: i32) -> (i32, i32, i32) {
    %c0_i32 = arith.constant 0 : i32
    %c0_i32_0 = arith.constant 0 : i32
    %c0_i32_1 = arith.constant 0 : i32
    return %arg0, %c0_i32, %c0_i32_0 : i32, i32, i32
  }
}

</mosaic_0001>

<llo_original>
// kernel: tpu_custom_call.1
$region0: #{tpu_custom_call.1}
  #allocation0 [shape = 'u32[]', space=smem, size = 0x4, offset = 0x4, fixed_abs, tag = 'smem constant byte address 0x4 - core index']
  #allocation1 [shape = 'u32[144,128]{1,0:T(1,128)}', space=vmem, size = 0x12000, scoped, tag = 'internal scratch']
  %s0 = inlined_call_operand.hbm [shape: f32[16,16], index: 0, kind: input, shape index: {}]
  %s1 = inlined_call_operand.hbm [shape: f32[2,16,1024], index: 1, kind: input, shape index: {}]
  %s2 = inlined_call_operand.hbm [shape: f32[2,16,1024], index: 2, kind: output, shape index: {0}]
  %s3 = inlined_call_operand.vmem [shape: f32[2,16,1], index: 3, kind: output, shape index: {1}]
  %4 = xla_tuple %s2, %s3
  %s5 = sld [smem:[#allocation0]]
  $region61: #{tpu_custom_call.1} parent=0
    _
  %s7 = ssub.s32 1, %s5
  %s8 = scalar_select 0, %s7, %s5
  $region1: #{tpu_custom_call.1} parent=0
    #allocation2 [shape = 'u8[8192]{0}', space=vmem, size = 0x2000, scoped, tag = 'input window, operand 0, single buffered']
    #allocation3 [shape = 's32[2]{0}', space=sflag, size = 0x8, scoped, tag = 'scoped memory for tpu_custom_call.1']
    #allocation4 [shape = 's32[2]{0}', space=sflag, size = 0x8, scoped, tag = 'scoped memory for tpu_custom_call.1']
    #allocation5 [shape = 'u8[131072]{0}', space=vmem, size = 0x20000, scoped, tag = 'input window, operand 1']
    #allocation6 [shape = 's32[2]{0}', space=sflag, size = 0x8, scoped, tag = 'scoped memory for tpu_custom_call.1']
    #allocation7 [shape = 'u8[131072]{0}', space=vmem, size = 0x20000, scoped, tag = 'output window, operand 0']
    %9 = vsyncpa [#allocation3], 0
    %10 = vsyncpa [#allocation6], 0
    %s11 = scalar_lea.sflag [#allocation6], 1
    %12 = vsyncpa %s11, 0
    %13 = vsyncpa [#allocation4], 0
    %s14 = scalar_lea.sflag [#allocation4], 1
    %15 = vsyncpa %s14, 0
    loop: start=0, step=1, limit=4
    $region2: #{tpu_custom_call.1} parent=1 // loop_pre_header
      _
    $region3: #{tpu_custom_call.1} parent=1 // loop_header
      %s17 = sphi 0, %s21
      %p18 = scmp.ge.s32.totalorder %s17, 4
      %s24 = sphi 0, %s36
      %s25 = sphi 0, %s32
      %s26 = sphi 0, %s24
      %s27 = sphi 0, %s25
      %s28 = sphi 0, %s26
      %s29 = sphi 0, %s27
      %s37 = sphi 0, %s37
      %s39 = sphi 0, %s37
      %s40 = sphi 0, %s39
      %s54 = sphi 0, %s40
      %s62 = sphi 0, %s64
      %s65 = sphi 0, %s62
      %s66 = sphi 0, %s65
      %s82 = sphi 0, %s66
      %s90 = sphi 0, %s92
      %s93 = sphi 0, %s90
      %s94 = sphi 0, %s93
      %s110 = sphi 0, %s94
      %s116 = sphi 0, %s118
      %s119 = sphi 0, %s116
      %s120 = sphi 0, %s119
      %s136 = sphi 0, %s120
    $region4: #{tpu_custom_call.1} parent=1 // loop_header_branch
      %20 = sbr.rel (%p18) target = $region8
    $region5: #{tpu_custom_call.1} parent=1 // loop_body
      %s22 = ssub.s32 %s17, 1
      %s23 = ssub.s32 %s17, 2
      %s30 = sadd.s32 1, %s25
      %p31 = scmp.ge.s32.totalorder %s30, 1
      %s32 = scalar_select %p31, 0, %s30
      %s33 = sadd.s32 1, %s24
      %s34 = scalar_select %p31, %s33, %s24
      %p35 = scmp.ge.s32.totalorder %s34, 2
      %s36 = scalar_select %p35, 0, %s34
      %s38 = sadd.s32 %s37, 1
      %p41 = scmp.eq.s32.totalorder %s17, 1
      %p42 = scmp.ne.s32.totalorder %s37, %s39
      %p43 = scmp.eq.s32.totalorder %s17, 0
      %p44 = por %p42, %p43
      %p45 = scmp.ne.s32.totalorder %s37, %s39
      %p46 = scmp.eq.s32.totalorder %s22, 1
      %p47 = por %p45, %p46
      %p48 = scmp.ne.s32.totalorder %s39, %s40
      %p49 = scmp.eq.s32.totalorder %s22, 0
      %p50 = por %p48, %p49
      %p51 = scmp.ne.s32.totalorder %s39, %s40
      %p52 = scmp.eq.s32.totalorder %s23, 1
      %p53 = por %p51, %p52
      %p55 = scmp.ne.s32.totalorder %s40, %s54
      %p56 = scmp.eq.s32.totalorder %s23, 0
      %p57 = por %p55, %p56
      %s58 = ssub.s32 %s24, %s36
      %s59 = ssub.s32 %s25, %s32
      %s60 = sor.u32 %s58, %s59
      %p61 = scmp.eq.s32.totalorder %s60, 0
      %s63 = sadd.s32 %s62, 1
      %s64 = scalar_select %p61, %s62, %s63
      %p67 = pneg %p61
      %p68 = scmp.eq.s32.totalorder %s17, 1
      %p69 = por %p67, %p68
      %p70 = scmp.ne.s32.totalorder %s62, %s65
      %p71 = scmp.eq.s32.totalorder %s17, 0
      %p72 = por %p70, %p71
      %p73 = scmp.ne.s32.totalorder %s62, %s65
      %p74 = scmp.eq.s32.totalorder %s22, 1
      %p75 = por %p73, %p74
      %p76 = scmp.ne.s32.totalorder %s65, %s66
      %p77 = scmp.eq.s32.totalorder %s22, 0
      %p78 = por %p76, %p77
      %p79 = scmp.ne.s32.totalorder %s65, %s66
      %p80 = scmp.eq.s32.totalorder %s23, 1
      %p81 = por %p79, %p80
      %p83 = scmp.ne.s32.totalorder %s66, %s82
      %p84 = scmp.eq.s32.totalorder %s23, 0
      %p85 = por %p83, %p84
      %s86 = ssub.s32 %s24, %s36
      %s87 = ssub.s32 %s25, %s32
      %s88 = sor.u32 %s86, %s87
      %p89 = scmp.eq.s32.totalorder %s88, 0
      %s91 = sadd.s32 %s90, 1
      %s92 = scalar_select %p89, %s90, %s91
      %p95 = pneg %p89
      %p96 = scmp.eq.s32.totalorder %s17, 1
      %p97 = por %p95, %p96
      %p98 = scmp.ne.s32.totalorder %s90, %s93
      %p99 = scmp.eq.s32.totalorder %s17, 0
      %p100 = por %p98, %p99
      %p101 = scmp.ne.s32.totalorder %s90, %s93
      %p102 = scmp.eq.s32.totalorder %s22, 1
      %p103 = por %p101, %p102
      %p104 = scmp.ne.s32.totalorder %s93, %s94
      %p105 = scmp.eq.s32.totalorder %s22, 0
      %p106 = por %p104, %p105
      %p107 = scmp.ne.s32.totalorder %s93, %s94
      %p108 = scmp.eq.s32.totalorder %s23, 1
      %p109 = por %p107, %p108
      %p111 = scmp.ne.s32.totalorder %s94, %s110
      %p112 = scmp.eq.s32.totalorder %s23, 0
      %p113 = por %p111, %p112
      %s114 = ssub.s32 %s24, %s36
      %p115 = scmp.eq.s32.totalorder %s114, 0
      %s117 = sadd.s32 %s116, 1
      %s118 = scalar_select %p115, %s116, %s117
      %p121 = pneg %p115
      %p122 = scmp.eq.s32.totalorder %s17, 1
      %p123 = por %p121, %p122
      %p124 = scmp.ne.s32.totalorder %s116, %s119
      %p125 = scmp.eq.s32.totalorder %s17, 0
      %p126 = por %p124, %p125
      %p127 = scmp.ne.s32.totalorder %s116, %s119
      %p128 = scmp.eq.s32.totalorder %s22, 1
      %p129 = por %p127, %p128
      %p130 = scmp.ne.s32.totalorder %s119, %s120
      %p131 = scmp.eq.s32.totalorder %s22, 0
      %p132 = por %p130, %p131
      %p133 = scmp.ne.s32.totalorder %s119, %s120
      %p134 = scmp.eq.s32.totalorder %s23, 1
      %p135 = por %p133, %p134
      %p137 = scmp.ne.s32.totalorder %s120, %s136
      %p138 = scmp.eq.s32.totalorder %s23, 0
      %p139 = por %p137, %p138
      %p140 = scmp.le.s32.totalorder 1, %s17
      %p141 = scmp.lt.s32.totalorder %s17, 3
      %p142 = pnand %p140, %p141
      %p143 = pneg %p142
      // Predicated region
      $region9: #{tpu_custom_call.1} parent=5 // pred_check
        _
      $region10: #{tpu_custom_call.1} parent=5 // pred_check_branch
        %145 = sbr.rel (%p142) target = $region12
      $region11: #{tpu_custom_call.1} parent=5 // pred_region
        %s146 = ssub.s32 %s17, 1
        // Predicated region
        $region13: #{tpu_custom_call.1} parent=11 // pred_check
          %p147 = pneg %p50
        $region14: #{tpu_custom_call.1} parent=11 // pred_check_branch
          %149 = sbr.rel (%p147) target = $region16
        $region15: #{tpu_custom_call.1} parent=11 // pred_region
          %s151 = ssub.s32 256, 256
          %152 = vsyncadd [#allocation3], %s151
          %s153 = sshll.u32 [#allocation2], 4
          %s154 = int_to_ptr.vmem [resolvable:$true] %s153
          %159 = dma.hbm_to_vmem [thread:$0]  %s0, 256, %s154, [#allocation3], 128, 128, 8
        $region16: #{tpu_custom_call.1} parent=11 // pred_fallthru
          _
      $region12: #{tpu_custom_call.1} parent=5 // pred_fallthru
        _
      %p160 = scmp.lt.s32.totalorder %s17, 2
      // Predicated region
      $region17: #{tpu_custom_call.1} parent=5 // pred_check
        %p161 = pneg %p160
      $region18: #{tpu_custom_call.1} parent=5 // pred_check_branch
        %163 = sbr.rel (%p161) target = $region20
      $region19: #{tpu_custom_call.1} parent=5 // pred_region
        // Predicated region
        $region21: #{tpu_custom_call.1} parent=19 // pred_check
          %p164 = pneg %p72
        $region22: #{tpu_custom_call.1} parent=19 // pred_check_branch
          %166 = sbr.rel (%p164) target = $region24
        $region23: #{tpu_custom_call.1} parent=19 // pred_region
          %s167 = sand.u32 %s62, 1
          %s168 = scalar_lea.sflag [#allocation6], %s167
          %s169 = sand.u32 %s62, 1
          %s170 = smul.addr %s169, 128
          %s171 = scalar_lea.vmem [#allocation5], %s170
          %s172 = smul.u32 8, %s25
          %s174 = ssub.s32 2048, 2048
          %175 = vsyncadd %s168, %s174
          %s176 = smul.addr %s24, 16
          %s177 = sadd.s32 %s172, %s176
          %s178 = smul.addr %s177, 128
          %s179 = scalar_lea.hbm %s1, %s178
          %s180 = sshll.u32 %s171, 4
          %s181 = int_to_ptr.vmem [resolvable:$true] %s180
          %186 = dma.hbm_to_vmem [thread:$0]  %s179, 2048, %s181, %s168, 1024, 1024, 64
        $region24: #{tpu_custom_call.1} parent=19 // pred_fallthru
          _
      $region20: #{tpu_custom_call.1} parent=5 // pred_fallthru
        _
      %p187 = scmp.le.s32.totalorder 1, %s17
      %p188 = scmp.lt.s32.totalorder %s17, 3
      %p189 = pnand %p187, %p188
      %p190 = pneg %p189
      // Predicated region
      $region25: #{tpu_custom_call.1} parent=5 // pred_check
        _
      $region26: #{tpu_custom_call.1} parent=5 // pred_check_branch
        %192 = sbr.rel (%p189) target = $region28
      $region27: #{tpu_custom_call.1} parent=5 // pred_region
        %s193 = ssub.s32 %s17, 1
        // Predicated region
        $region29: #{tpu_custom_call.1} parent=27 // pred_check
          %p194 = pneg %p50
        $region30: #{tpu_custom_call.1} parent=27 // pred_check_branch
          %196 = sbr.rel (%p194) target = $region32
        $region31: #{tpu_custom_call.1} parent=27 // pred_region
          %197 = dma.done [#allocation3], 256
        $region32: #{tpu_custom_call.1} parent=27 // pred_fallthru
          _
        %s198 = sand.u32 %s65, 1
        %s199 = scalar_lea.sflag [#allocation6], %s198
        %s200 = sand.u32 %s65, 1
        %s201 = smul.addr %s200, 128
        %s202 = scalar_lea.vmem [#allocation5], %s201
        // Predicated region
        $region33: #{tpu_custom_call.1} parent=27 // pred_check
          %p203 = pneg %p78
        $region34: #{tpu_custom_call.1} parent=27 // pred_check_branch
          %205 = sbr.rel (%p203) target = $region36
        $region35: #{tpu_custom_call.1} parent=27 // pred_region
          %206 = dma.done %s199, 2048
        $region36: #{tpu_custom_call.1} parent=27 // pred_fallthru
          _
        %p207 = pneg %p50
        %p208 = pneg %p47
        %s209 = sand.u32 %s65, 1
        %s210 = scalar_lea.sflag [#allocation6], %s209
        %s211 = sand.u32 %s65, 1
        %s212 = smul.addr %s211, 128
        %s213 = scalar_lea.vmem [#allocation5], %s212
        %p214 = pneg %p78
        %p215 = pneg %p75
        %p216 = pneg %p106
        %p217 = pneg %p103
        %s218 = sand.u32 %s93, 1
        %s219 = scalar_lea.sflag [#allocation4], %s218
        %s220 = sand.u32 %s93, 1
        %s221 = smul.addr %s220, 128
        %s222 = scalar_lea.vmem [#allocation7], %s221
        %p223 = pneg %p132
        %p224 = pneg %p129
        %p225 = scmp.lt.s32.totalorder %s26, 1
        %s226 = scalar_select %p225, %s26, 1
        %s227 = smul.addr %s226, 2
        %s228 = smul.addr %s227, 8
        %s229 = scalar_lea.vmem %s3, %s228
        %s230 = smul.u32 8, %s27
        %s231 = smul.u32 8, %s27
        %p232 = scmp.lt.s32.totalorder %s26, 1
        %s233 = scalar_select %p232, %s26, 1
        %s234 = smul.addr %s233, 2
        %s235 = smul.addr %s234, 8
        %s236 = scalar_lea.vmem %s3, %s235
        %v237 = vld [vmem:[%s202] sm:$0xff]
        %v238 = vld [vmem:[%s202 + $0x8] sm:$0xff]
        %v239 = vld [vmem:[%s202 + $0x10] sm:$0xff]
        %v240 = vld [vmem:[%s202 + $0x18] sm:$0xff]
        %v241 = vld [vmem:[%s202 + $0x20] sm:$0xff]
        %v242 = vld [vmem:[%s202 + $0x28] sm:$0xff]
        %v243 = vld [vmem:[%s202 + $0x30] sm:$0xff]
        %v244 = vld [vmem:[%s202 + $0x38] sm:$0xff]
        %v245 = vld [vmem:[%s202 + $0x40] sm:$0xff]
        %v246 = vld [vmem:[%s202 + $0x48] sm:$0xff]
        %v247 = vld [vmem:[%s202 + $0x50] sm:$0xff]
        %v248 = vld [vmem:[%s202 + $0x58] sm:$0xff]
        %v249 = vld [vmem:[%s202 + $0x60] sm:$0xff]
        %v250 = vld [vmem:[%s202 + $0x68] sm:$0xff]
        %v251 = vld [vmem:[%s202 + $0x70] sm:$0xff]
        %v252 = vld [vmem:[%s202 + $0x78] sm:$0xff]
        %v253 = vld [vmem:[#allocation2] sm:$0xff]
        %v254 = vld [vmem:[#allocation2 + $0x8] sm:$0xff]
        %vm255 = vcmask 130048
        %v257 = vsel %vm255, %v253, 0
        %v260 = vsel %vm255, %v254, 0
        %262 = vmatprep.subr.mxu0 %v238
        %263 = vmatpush1.msra.mxu0 %v237
        %264 = vmatprep.subr.mxu0 %v246
        %265 = vmatpush1.msra.mxu0 %v245
        %266 = vmatprep.subr.mxu0 0.0
        %267 = vmatpush1.msra.mxu0 0.0
        %268 = vmatprep.subr.mxu0 0.0
        %269 = vmatpush1.msra.mxu0 0.0
        %270 = vmatprep.subr.mxu0 0.0
        %271 = vmatpush1.msra.mxu0 0.0
        %272 = vmatprep.subr.mxu0 0.0
        %273 = vmatpush1.msra.mxu0 0.0
        %274 = vmatprep.subr.mxu0 0.0
        %275 = vmatpush1.msra.mxu0 0.0
        %276 = vmatprep.subr.mxu0 0.0
        %277 = vmatpush1.msra.mxu0 0.0
        %278 = vmatprep.subr.mxu0 0.0
        %279 = vmatpush1.msra.mxu0 0.0
        %280 = vmatprep.subr.mxu0 0.0
        %281 = vmatpush1.msra.mxu0 0.0
        %282 = vmatprep.subr.mxu0 0.0
        %283 = vmatpush1.msra.mxu0 0.0
        %284 = vmatprep.subr.mxu0 0.0
        %285 = vmatpush1.msra.mxu0 0.0
        %286 = vmatprep.subr.mxu0 0.0
        %287 = vmatpush1.msra.mxu0 0.0
        %288 = vmatprep.subr.mxu0 0.0
        %289 = vmatpush1.msra.mxu0 0.0
        %290 = vmatprep.subr.mxu0 0.0
        %291 = vmatpush1.msra.mxu0 0.0
        %292 = vmatprep.subr.mxu0 0.0
        %293 = vmatpush1.msra.mxu0 0.0
        %294 = vmatprep.subr.mxu0 0.0
        %295 = vmatpush1.msra.mxu0 0.0
        %296 = vmatprep.subr.mxu0 0.0
        %297 = vmatpush1.msra.mxu0 0.0
        %298 = vmatprep.subr.mxu0 0.0
        %299 = vmatpush1.msra.mxu0 0.0
        %300 = vmatprep.subr.mxu0 0.0
        %301 = vmatpush1.msra.mxu0 0.0
        %302 = vmatprep.subr.mxu0 0.0
        %303 = vmatpush1.msra.mxu0 0.0
        %304 = vmatprep.subr.mxu0 0.0
        %305 = vmatpush1.msra.mxu0 0.0
        %306 = vmatprep.subr.mxu0 0.0
        %307 = vmatpush1.msra.mxu0 0.0
        %308 = vmatprep.subr.mxu0 0.0
        %309 = vmatpush1.msra.mxu0 0.0
        %310 = vmatprep.subr.mxu0 0.0
        %311 = vmatpush1.msra.mxu0 0.0
        %312 = vmatprep.subr.mxu0 0.0
        %313 = vmatpush1.msra.mxu0 0.0
        %314 = vmatprep.subr.mxu0 0.0
        %315 = vmatpush1.msra.mxu0 0.0
        %316 = vmatprep.subr.mxu0 0.0
        %317 = vmatpush1.msra.mxu0 0.0
        %318 = vmatprep.subr.mxu0 0.0
        %319 = vmatpush1.msra.mxu0 0.0
        %320 = vmatprep.subr.mxu0 0.0
        %321 = vmatpush1.msra.mxu0 0.0
        %322 = vmatprep.subr.mxu0 0.0
        %323 = vmatpush1.msra.mxu0 0.0
        %324 = vmatprep.subr.mxu0 0.0
        %325 = vmatpush1.msra.mxu0 0.0
        %326 = vmatprep.mubr.f32.mxu0 0.0
        %327 = vmatmul.mubr.f32.gmra.mrb[0].mxu0 %v257
        %v328 = vpop.f32.mrb[0].mxu0
        %v329 = vadd.f32 0.0, %v328
        %v330 = vpop.f32.mrb[0].mxu0
        %v331 = vadd.f32 0.0, %v330
        %332 = vmatprep.mubr.f32.mxu0 0.0
        %333 = vmatmul.mubr.f32.gmra.mrb[0].mxu0 %v260
        %v334 = vpop.f32.mrb[0].mxu0
        %v335 = vadd.f32 0.0, %v334
        %v336 = vpop.f32.mrb[0].mxu0
        %v337 = vadd.f32 0.0, %v336
        %338 = vdwg.mxu0
        %339 = vmatprep.subr.mxu0 %v240
        %340 = vmatpush1.msra.mxu0 %v239
        %341 = vmatprep.subr.mxu0 %v248
        %342 = vmatpush1.msra.mxu0 %v247
        %343 = vmatprep.subr.mxu0 0.0
        %344 = vmatpush1.msra.mxu0 0.0
        %345 = vmatprep.subr.mxu0 0.0
        %346 = vmatpush1.msra.mxu0 0.0
        %347 = vmatprep.subr.mxu0 0.0
        %348 = vmatpush1.msra.mxu0 0.0
        %349 = vmatprep.subr.mxu0 0.0
        %350 = vmatpush1.msra.mxu0 0.0
        %351 = vmatprep.subr.mxu0 0.0
        %352 = vmatpush1.msra.mxu0 0.0
        %353 = vmatprep.subr.mxu0 0.0
        %354 = vmatpush1.msra.mxu0 0.0
        %355 = vmatprep.subr.mxu0 0.0
        %356 = vmatpush1.msra.mxu0 0.0
        %357 = vmatprep.subr.mxu0 0.0
        %358 = vmatpush1.msra.mxu0 0.0
        %359 = vmatprep.subr.mxu0 0.0
        %360 = vmatpush1.msra.mxu0 0.0
        %361 = vmatprep.subr.mxu0 0.0
        %362 = vmatpush1.msra.mxu0 0.0
        %363 = vmatprep.subr.mxu0 0.0
        %364 = vmatpush1.msra.mxu0 0.0
        %365 = vmatprep.subr.mxu0 0.0
        %366 = vmatpush1.msra.mxu0 0.0
        %367 = vmatprep.subr.mxu0 0.0
        %368 = vmatpush1.msra.mxu0 0.0
        %369 = vmatprep.subr.mxu0 0.0
        %370 = vmatpush1.msra.mxu0 0.0
        %371 = vmatprep.subr.mxu0 0.0
        %372 = vmatpush1.msra.mxu0 0.0
        %373 = vmatprep.subr.mxu0 0.0
        %374 = vmatpush1.msra.mxu0 0.0
        %375 = vmatprep.subr.mxu0 0.0
        %376 = vmatpush1.msra.mxu0 0.0
        %377 = vmatprep.subr.mxu0 0.0
        %378 = vmatpush1.msra.mxu0 0.0
        %379 = vmatprep.subr.mxu0 0.0
        %380 = vmatpush1.msra.mxu0 0.0
        %381 = vmatprep.subr.mxu0 0.0
        %382 = vmatpush1.msra.mxu0 0.0
        %383 = vmatprep.subr.mxu0 0.0
        %384 = vmatpush1.msra.mxu0 0.0
        %385 = vmatprep.subr.mxu0 0.0
        %386 = vmatpush1.msra.mxu0 0.0
        %387 = vmatprep.subr.mxu0 0.0
        %388 = vmatpush1.msra.mxu0 0.0
        %389 = vmatprep.subr.mxu0 0.0
        %390 = vmatpush1.msra.mxu0 0.0
        %391 = vmatprep.subr.mxu0 0.0
        %392 = vmatpush1.msra.mxu0 0.0
        %393 = vmatprep.subr.mxu0 0.0
        %394 = vmatpush1.msra.mxu0 0.0
        %395 = vmatprep.subr.mxu0 0.0
        %396 = vmatpush1.msra.mxu0 0.0
        %397 = vmatprep.subr.mxu0 0.0
        %398 = vmatpush1.msra.mxu0 0.0
        %399 = vmatprep.subr.mxu0 0.0
        %400 = vmatpush1.msra.mxu0 0.0
        %401 = vmatprep.subr.mxu0 0.0
        %402 = vmatpush1.msra.mxu0 0.0
        %403 = vmatprep.mubr.f32.mxu0 0.0
        %404 = vmatmul.mubr.f32.gmra.mrb[0].mxu0 %v257
        %v405 = vpop.f32.mrb[0].mxu0
        %v406 = vadd.f32 0.0, %v405
        %v407 = vpop.f32.mrb[0].mxu0
        %v408 = vadd.f32 0.0, %v407
        %409 = vmatprep.mubr.f32.mxu0 0.0
        %410 = vmatmul.mubr.f32.gmra.mrb[0].mxu0 %v260
        %v411 = vpop.f32.mrb[0].mxu0
        %v412 = vadd.f32 0.0, %v411
        %v413 = vpop.f32.mrb[0].mxu0
        %v414 = vadd.f32 0.0, %v413
        %415 = vdwg.mxu0
        %416 = vmatprep.subr.mxu0 %v242
        %417 = vmatpush1.msra.mxu0 %v241
        %418 = vmatprep.subr.mxu0 %v250
        %419 = vmatpush1.msra.mxu0 %v249
        %420 = vmatprep.subr.mxu0 0.0
        %421 = vmatpush1.msra.mxu0 0.0
        %422 = vmatprep.subr.mxu0 0.0
        %423 = vmatpush1.msra.mxu0 0.0
        %424 = vmatprep.subr.mxu0 0.0
        %425 = vmatpush1.msra.mxu0 0.0
        %426 = vmatprep.subr.mxu0 0.0
        %427 = vmatpush1.msra.mxu0 0.0
        %428 = vmatprep.subr.mxu0 0.0
        %429 = vmatpush1.msra.mxu0 0.0
        %430 = vmatprep.subr.mxu0 0.0
        %431 = vmatpush1.msra.mxu0 0.0
        %432 = vmatprep.subr.mxu0 0.0
        %433 = vmatpush1.msra.mxu0 0.0
        %434 = vmatprep.subr.mxu0 0.0
        %435 = vmatpush1.msra.mxu0 0.0
        %436 = vmatprep.subr.mxu0 0.0
        %437 = vmatpush1.msra.mxu0 0.0
        %438 = vmatprep.subr.mxu0 0.0
        %439 = vmatpush1.msra.mxu0 0.0
        %440 = vmatprep.subr.mxu0 0.0
        %441 = vmatpush1.msra.mxu0 0.0
        %442 = vmatprep.subr.mxu0 0.0
        %443 = vmatpush1.msra.mxu0 0.0
        %444 = vmatprep.subr.mxu0 0.0
        %445 = vmatpush1.msra.mxu0 0.0
        %446 = vmatprep.subr.mxu0 0.0
        %447 = vmatpush1.msra.mxu0 0.0
        %448 = vmatprep.subr.mxu0 0.0
        %449 = vmatpush1.msra.mxu0 0.0
        %450 = vmatprep.subr.mxu0 0.0
        %451 = vmatpush1.msra.mxu0 0.0
        %452 = vmatprep.subr.mxu0 0.0
        %453 = vmatpush1.msra.mxu0 0.0
        %454 = vmatprep.subr.mxu0 0.0
        %455 = vmatpush1.msra.mxu0 0.0
        %456 = vmatprep.subr.mxu0 0.0
        %457 = vmatpush1.msra.mxu0 0.0
        %458 = vmatprep.subr.mxu0 0.0
        %459 = vmatpush1.msra.mxu0 0.0
        %460 = vmatprep.subr.mxu0 0.0
        %461 = vmatpush1.msra.mxu0 0.0
        %462 = vmatprep.subr.mxu0 0.0
        %463 = vmatpush1.msra.mxu0 0.0
        %464 = vmatprep.subr.mxu0 0.0
        %465 = vmatpush1.msra.mxu0 0.0
        %466 = vmatprep.subr.mxu0 0.0
        %467 = vmatpush1.msra.mxu0 0.0
        %468 = vmatprep.subr.mxu0 0.0
        %469 = vmatpush1.msra.mxu0 0.0
        %470 = vmatprep.subr.mxu0 0.0
        %471 = vmatpush1.msra.mxu0 0.0
        %472 = vmatprep.subr.mxu0 0.0
        %473 = vmatpush1.msra.mxu0 0.0
        %474 = vmatprep.subr.mxu0 0.0
        %475 = vmatpush1.msra.mxu0 0.0
        %476 = vmatprep.subr.mxu0 0.0
        %477 = vmatpush1.msra.mxu0 0.0
        %478 = vmatprep.subr.mxu0 0.0
        %479 = vmatpush1.msra.mxu0 0.0
        %480 = vmatprep.mubr.f32.mxu0 0.0
        %481 = vmatmul.mubr.f32.gmra.mrb[0].mxu0 %v257
        %v482 = vpop.f32.mrb[0].mxu0
        %v483 = vadd.f32 0.0, %v482
        %v484 = vpop.f32.mrb[0].mxu0
        %v485 = vadd.f32 0.0, %v484
        %486 = vmatprep.mubr.f32.mxu0 0.0
        %487 = vmatmul.mubr.f32.gmra.mrb[0].mxu0 %v260
        %v488 = vpop.f32.mrb[0].mxu0
        %v489 = vadd.f32 0.0, %v488
        %v490 = vpop.f32.mrb[0].mxu0
        %v491 = vadd.f32 0.0, %v490
        %492 = vdwg.mxu0
        %493 = vmatprep.subr.mxu0 %v244
        %494 = vmatpush1.msra.mxu0 %v243
        %495 = vmatprep.subr.mxu0 %v252
        %496 = vmatpush1.msra.mxu0 %v251
        %497 = vmatprep.subr.mxu0 0.0
        %498 = vmatpush1.msra.mxu0 0.0
        %499 = vmatprep.subr.mxu0 0.0
        %500 = vmatpush1.msra.mxu0 0.0
        %501 = vmatprep.subr.mxu0 0.0
        %502 = vmatpush1.msra.mxu0 0.0
        %503 = vmatprep.subr.mxu0 0.0
        %504 = vmatpush1.msra.mxu0 0.0
        %505 = vmatprep.subr.mxu0 0.0
        %506 = vmatpush1.msra.mxu0 0.0
        %507 = vmatprep.subr.mxu0 0.0
        %508 = vmatpush1.msra.mxu0 0.0
        %509 = vmatprep.subr.mxu0 0.0
        %510 = vmatpush1.msra.mxu0 0.0
        %511 = vmatprep.subr.mxu0 0.0
        %512 = vmatpush1.msra.mxu0 0.0
        %513 = vmatprep.subr.mxu0 0.0
        %514 = vmatpush1.msra.mxu0 0.0
        %515 = vmatprep.subr.mxu0 0.0
        %516 = vmatpush1.msra.mxu0 0.0
        %517 = vmatprep.subr.mxu0 0.0
        %518 = vmatpush1.msra.mxu0 0.0
        %519 = vmatprep.subr.mxu0 0.0
        %520 = vmatpush1.msra.mxu0 0.0
        %521 = vmatprep.subr.mxu0 0.0
        %522 = vmatpush1.msra.mxu0 0.0
        %523 = vmatprep.subr.mxu0 0.0
        %524 = vmatpush1.msra.mxu0 0.0
        %525 = vmatprep.subr.mxu0 0.0
        %526 = vmatpush1.msra.mxu0 0.0
        %527 = vmatprep.subr.mxu0 0.0
        %528 = vmatpush1.msra.mxu0 0.0
        %529 = vmatprep.subr.mxu0 0.0
        %530 = vmatpush1.msra.mxu0 0.0
        %531 = vmatprep.subr.mxu0 0.0
        %532 = vmatpush1.msra.mxu0 0.0
        %533 = vmatprep.subr.mxu0 0.0
        %534 = vmatpush1.msra.mxu0 0.0
        %535 = vmatprep.subr.mxu0 0.0
        %536 = vmatpush1.msra.mxu0 0.0
        %537 = vmatprep.subr.mxu0 0.0
        %538 = vmatpush1.msra.mxu0 0.0
        %539 = vmatprep.subr.mxu0 0.0
        %540 = vmatpush1.msra.mxu0 0.0
        %541 = vmatprep.subr.mxu0 0.0
        %542 = vmatpush1.msra.mxu0 0.0
        %543 = vmatprep.subr.mxu0 0.0
        %544 = vmatpush1.msra.mxu0 0.0
        %545 = vmatprep.subr.mxu0 0.0
        %546 = vmatpush1.msra.mxu0 0.0
        %547 = vmatprep.subr.mxu0 0.0
        %548 = vmatpush1.msra.mxu0 0.0
        %549 = vmatprep.subr.mxu0 0.0
        %550 = vmatpush1.msra.mxu0 0.0
        %551 = vmatprep.subr.mxu0 0.0
        %552 = vmatpush1.msra.mxu0 0.0
        %553 = vmatprep.subr.mxu0 0.0
        %554 = vmatpush1.msra.mxu0 0.0
        %555 = vmatprep.subr.mxu0 0.0
        %556 = vmatpush1.msra.mxu0 0.0
        %557 = vmatprep.mubr.f32.mxu0 0.0
        %558 = vmatmul.mubr.f32.gmra.mrb[0].mxu0 %v257
        %v559 = vpop.f32.mrb[0].mxu0
        %v560 = vadd.f32 0.0, %v559
        %v561 = vpop.f32.mrb[0].mxu0
        %v562 = vadd.f32 0.0, %v561
        %563 = vmatprep.mubr.f32.mxu0 0.0
        %564 = vmatmul.mubr.f32.gmra.mrb[0].mxu0 %v260
        %v565 = vpop.f32.mrb[0].mxu0
        %v566 = vadd.f32 0.0, %v565
        %v567 = vpop.f32.mrb[0].mxu0
        %v568 = vadd.f32 0.0, %v567
        %569 = vdwg.mxu0
        %570 = vst [vmem:[%s222] sm:$0xff] %v329
        %571 = vst [vmem:[%s222 + $0x8] sm:$0xff] %v331
        %572 = vst [vmem:[%s222 + $0x10] sm:$0xff] %v406
        %573 = vst [vmem:[%s222 + $0x18] sm:$0xff] %v408
        %574 = vst [vmem:[%s222 + $0x20] sm:$0xff] %v483
        %575 = vst [vmem:[%s222 + $0x28] sm:$0xff] %v485
        %576 = vst [vmem:[%s222 + $0x30] sm:$0xff] %v560
        %577 = vst [vmem:[%s222 + $0x38] sm:$0xff] %v562
        %578 = vst [vmem:[%s222 + $0x40] sm:$0xff] %v335
        %579 = vst [vmem:[%s222 + $0x48] sm:$0xff] %v337
        %580 = vst [vmem:[%s222 + $0x50] sm:$0xff] %v412
        %581 = vst [vmem:[%s222 + $0x58] sm:$0xff] %v414
        %582 = vst [vmem:[%s222 + $0x60] sm:$0xff] %v489
        %583 = vst [vmem:[%s222 + $0x68] sm:$0xff] %v491
        %584 = vst [vmem:[%s222 + $0x70] sm:$0xff] %v566
        %585 = vst [vmem:[%s222 + $0x78] sm:$0xff] %v568
        %v586 = vadd.f32 %v237, %v238
        %v587 = vadd.f32 %v586, %v239
        %v588 = vadd.f32 %v587, %v240
        %v589 = vadd.f32 %v588, %v241
        %v590 = vadd.f32 %v589, %v242
        %v591 = vadd.f32 %v590, %v243
        %v592 = vadd.f32 %v591, %v244
        %593 = vadd.xlane.f32.xlu0 %v592
        %v594 = vpop.xlane.xlu0 %593
        %v595 = vadd.f32 %v245, %v246
        %v596 = vadd.f32 %v595, %v247
        %v597 = vadd.f32 %v596, %v248
        %v598 = vadd.f32 %v597, %v249
        %v599 = vadd.f32 %v598, %v250
        %v600 = vadd.f32 %v599, %v251
        %v601 = vadd.f32 %v600, %v252
        %602 = vadd.xlane.f32.xlu0 %v601
        %v603 = vpop.xlane.xlu0 %602
        %p604 = scmp.eq.s32.totalorder %s27, 0
        // Predicated region
        $region37: #{tpu_custom_call.1} parent=27 // pred_check
          %p605 = pneg %p604
        $region38: #{tpu_custom_call.1} parent=27 // pred_check_branch
          %607 = sbr.rel (%p605) target = $region40
        $region39: #{tpu_custom_call.1} parent=27 // pred_region
          %vm608 = vcmask 7168
          %609 = vst.msk [vmem:[%s236] sm:$0xff] %vm608, 0.0
          %610 = vst.msk [vmem:[%s236 + $0x8] sm:$0xff] %vm608, 0.0
        $region40: #{tpu_custom_call.1} parent=27 // pred_fallthru
          _
        %v611 = vld [vmem:[%s236] sm:$0xff]
        %v612 = vld [vmem:[%s236 + $0x8] sm:$0xff]
        %v613 = vadd.f32 %v611, %v594
        %v614 = vadd.f32 %v612, %v603
        %vm615 = vcmask 7168
        %616 = vst.msk [vmem:[%s236] sm:$0xff] %vm615, %v613
        %617 = vst.msk [vmem:[%s236 + $0x8] sm:$0xff] %vm615, %v614
        %s618 = sand.u32 %s93, 1
        %s619 = scalar_lea.sflag [#allocation4], %s618
        %s620 = sand.u32 %s93, 1
        %s621 = smul.addr %s620, 128
        %s622 = scalar_lea.vmem [#allocation7], %s621
        %p623 = scmp.lt.s32.totalorder %s26, 1
        %s624 = scalar_select %p623, %s26, 1
        %s625 = smul.addr %s624, 2
        %s626 = smul.addr %s625, 8
        %s627 = scalar_lea.vmem %s3, %s626
        // Predicated region
        $region41: #{tpu_custom_call.1} parent=27 // pred_check
          %p628 = pneg %p103
        $region42: #{tpu_custom_call.1} parent=27 // pred_check_branch
          %630 = sbr.rel (%p628) target = $region44
        $region43: #{tpu_custom_call.1} parent=27 // pred_region
          %s631 = smul.u32 8, %s27
          %s633 = ssub.s32 2048, 2048
          %634 = vsyncadd %s619, %s633
          %s635 = smul.addr %s26, 16
          %s636 = sadd.s32 %s631, %s635
          %s637 = smul.addr %s636, 128
          %s638 = scalar_lea.hbm %s2, %s637
          %s639 = sshll.u32 %s622, 4
          %s640 = int_to_ptr.vmem [resolvable:$true] %s639
          %645 = dma.vmem_to_hbm [thread:$0]  %s640, 2048, %s638, %s619, 1024, 1024, 64
        $region44: #{tpu_custom_call.1} parent=27 // pred_fallthru
          _
        // Predicated region
        $region45: #{tpu_custom_call.1} parent=27 // pred_check
          %p646 = pneg %p129
        $region46: #{tpu_custom_call.1} parent=27 // pred_check_branch
          %648 = sbr.rel (%p646) target = $region48
        $region47: #{tpu_custom_call.1} parent=27 // pred_region
          _
        $region48: #{tpu_custom_call.1} parent=27 // pred_fallthru
          _
      $region28: #{tpu_custom_call.1} parent=5 // pred_fallthru
        _
      %p649 = scmp.le.s32.totalorder 2, %s17
      // Predicated region
      $region49: #{tpu_custom_call.1} parent=5 // pred_check
        %p650 = pneg %p649
      $region50: #{tpu_custom_call.1} parent=5 // pred_check_branch
        %652 = sbr.rel (%p650) target = $region52
      $region51: #{tpu_custom_call.1} parent=5 // pred_region
        %s653 = ssub.s32 %s17, 2
        // Predicated region
        $region53: #{tpu_custom_call.1} parent=51 // pred_check
          %p654 = pneg %p109
        $region54: #{tpu_custom_call.1} parent=51 // pred_check_branch
          %656 = sbr.rel (%p654) target = $region56
        $region55: #{tpu_custom_call.1} parent=51 // pred_region
          %s657 = sand.u32 %s94, 1
          %s658 = scalar_lea.sflag [#allocation4], %s657
          %s659 = sand.u32 %s94, 1
          %s660 = smul.addr %s659, 128
          %s661 = scalar_lea.vmem [#allocation7], %s660
          %662 = dma.done %s658, 2048
        $region56: #{tpu_custom_call.1} parent=51 // pred_fallthru
          _
        // Predicated region
        $region57: #{tpu_custom_call.1} parent=51 // pred_check
          %p663 = pneg %p135
        $region58: #{tpu_custom_call.1} parent=51 // pred_check_branch
          %665 = sbr.rel (%p663) target = $region60
        $region59: #{tpu_custom_call.1} parent=51 // pred_region
          %p666 = scmp.lt.s32.totalorder %s28, 1
          %s667 = scalar_select %p666, %s28, 1
          %s668 = smul.addr %s667, 2
          %s669 = smul.addr %s668, 8
          %s670 = scalar_lea.vmem %s3, %s669
        $region60: #{tpu_custom_call.1} parent=51 // pred_fallthru
          _
      $region52: #{tpu_custom_call.1} parent=5 // pred_fallthru
        _
    $region6: #{tpu_custom_call.1} parent=1 // loop_footer
      %s21 = sadd.s32 1, %s17
    $region7: #{tpu_custom_call.1} parent=1 // loop_footer_branch
      %16 = sbr.rel target = $region3
    $region8: #{tpu_custom_call.1} parent=1 // loop_exit
      _
    %671 = vsyncpa [#allocation3], 1
    %s672 = scalar_lea.sflag [#allocation3], 1
    %673 = vsyncpa %s672, 1
    %674 = vsyncpa [#allocation6], 1
    %s675 = scalar_lea.sflag [#allocation6], 1
    %676 = vsyncpa %s675, 1
    %677 = vsyncpa [#allocation4], 1
    %s678 = scalar_lea.sflag [#allocation4], 1
    %679 = vsyncpa %s678, 1

</llo_original>
